<compile_context>
chip_gen: v6e
topology: v6e:2x2x1
jax: 0.10.0
libtpu: 0.0.40
codegen_flags: <defaults>
</compile_context>

<pallas_src>
import numpy as np
import jax
import jax.numpy as jnp
from jax.experimental import pallas as pl
from jax.experimental.pallas import tpu as pltpu

LANE = 128  # lane width


def _round_up(n, m):
    return ((n + m - 1) // m) * m


# ---------------------------------------------------------------------------
# Pallas kernel: 3x (Linear + ReLU) + fused heads projection
# ---------------------------------------------------------------------------
def _actor_critic_kernel(x_ref, w1_ref, b1_ref, w2_ref, b2_ref,
                         w3_ref, b3_ref, wh_ref, bh_ref, out_ref):
    wdt = w1_ref.dtype  # bf16 (or f32) weights; accumulation stays f32

    h = jnp.dot(x_ref[...].astype(wdt), w1_ref[...],
                preferred_element_type=jnp.float32) + b1_ref[...]
    h = jnp.maximum(h, 0.0)

    h = jnp.dot(h.astype(wdt), w2_ref[...],
                preferred_element_type=jnp.float32) + b2_ref[...]
    h = jnp.maximum(h, 0.0)

    h = jnp.dot(h.astype(wdt), w3_ref[...],
                preferred_element_type=jnp.float32) + b3_ref[...]
    h = jnp.maximum(h, 0.0)

    # fused heads: [actor_head_0 | actor_head_1 | ... | critic | zero padding]
    out = jnp.dot(h.astype(wdt), wh_ref[...],
                  preferred_element_type=jnp.float32) + bh_ref[...]
    out_ref[...] = out.astype(out_ref.dtype)


# ---------------------------------------------------------------------------
# Generation-aware VMEM budgeting
# ---------------------------------------------------------------------------
def _vmem_budget():
    """Returns (tile_budget_bytes, vmem_limit_bytes, max_tile_rows)."""
    phys = 64 * 1024 * 1024  # conservative (v7x per-TC) if the query fails
    try:
        info = pltpu.get_tpu_info()
        phys = int(getattr(info, "vmem_capacity_bytes", phys)) or phys
    except Exception:
        pass
    # v5e/v6e (128 MiB phys) -> 100 MiB scoped limit; v7x (64 MiB) -> 48 MiB.
    limit = max(48 * 1024 * 1024, min(phys - 24 * 1024 * 1024, 100 * 1024 * 1024))
    budget = limit - 20 * 1024 * 1024  # headroom for compiler scratch
    tb_cap = 2048 if phys >= 96 * 1024 * 1024 else 1024
    return budget, limit, tb_cap


def _pick_batch_tile(batch, d_in, h_pad, out_pad, weight_bytes, act_bytes,
                     vmem_budget_bytes, tb_cap):
    # Per-row VMEM cost: double-buffered activation in/out tiles (act dtype) +
    # f32 hidden intermediates / cast temporaries.  Weights count 2x because
    # BlockSpecs double-buffer even with constant index_maps.
    per_row = (2 * act_bytes * d_in
               + 2 * act_bytes * out_pad
               + 4 * 4 * h_pad)
    avail = max(vmem_budget_bytes - 2 * weight_bytes, 32 * per_row)
    tb = min(tb_cap, avail // per_row)
    # Guarantee >=2 grid steps whenever the batch spans more than one tile so
    # the "parallel" batch axis can feed both v7x TensorCores (harmless 1-TC).
    tb = min(tb, max(32, _round_up(-(-batch // 2), 32)))
    tb = max(32, (tb // 32) * 32)          # multiple of 32 (covers bf16 tiling)
    return min(tb, _round_up(batch, 32))


# ---------------------------------------------------------------------------
# Forward wrapper
# ---------------------------------------------------------------------------
def actor_critic_forward(obs, params, action_dims, *, block_b=None):
    """Fused forward pass. Returns (list_of_logits, value) like the torch module."""
    w1, b1, w2, b2, w3, b3, wh, bh = params
    d_in, h_pad = w1.shape
    out_pad = wh.shape[1]

    B = obs.shape[0]
    # obs.view(batch, -1); ship activations in the weight dtype (bf16) so the
    # in-kernel cast is a no-op and input HBM bytes are halved.
    x = obs.reshape(B, -1).astype(w1.dtype)
    assert x.shape[1] == d_in, "obs feature dim must match w1 rows"

    weight_bytes = sum(int(np.prod(p.shape)) * p.dtype.itemsize for p in params)
    act_bytes = x.dtype.itemsize
    budget, vmem_limit, tb_cap = _vmem_budget()

    if block_b is None:
        tb = _pick_batch_tile(B, d_in, h_pad, out_pad, weight_bytes, act_bytes,
                              budget, tb_cap)
    else:
        tb = max(16, _round_up(min(block_b, _round_up(B, 16)), 16))

    grid = (pl.cdiv(B, tb),)
    flops = 2 * B * (d_in * h_pad + 2 * h_pad * h_pad + h_pad * out_pad)
    bytes_accessed = B * (d_in + out_pad) * act_bytes + weight_bytes

    fused_out = pl.pallas_call(
        _actor_critic_kernel,
        out_shape=jax.ShapeDtypeStruct((B, out_pad), x.dtype),
        grid=grid,
        in_specs=[
            pl.BlockSpec((tb, d_in), lambda i: (i, 0)),      # activations: batch-tiled
            pl.BlockSpec((d_in, h_pad), lambda i: (0, 0)),   # weights: VMEM-resident
            pl.BlockSpec((1, h_pad), lambda i: (0, 0)),
            pl.BlockSpec((h_pad, h_pad), lambda i: (0, 0)),
            pl.BlockSpec((1, h_pad), lambda i: (0, 0)),
            pl.BlockSpec((h_pad, h_pad), lambda i: (0, 0)),
            pl.BlockSpec((1, h_pad), lambda i: (0, 0)),
            pl.BlockSpec((h_pad, out_pad), lambda i: (0, 0)),
            pl.BlockSpec((1, out_pad), lambda i: (0, 0)),
        ],
        out_specs=pl.BlockSpec((tb, out_pad), lambda i: (i, 0)),
        compiler_params=pltpu.CompilerParams(
            dimension_semantics=("parallel",),   # v7x: shard batch grid over 2 TCs
            vmem_limit_bytes=int(vmem_limit),
        ),
        cost_estimate=pl.CostEstimate(
            flops=int(flops), transcendentals=0,
            bytes_accessed=int(bytes_accessed)),
    )(x, w1, b1, w2, b2, w3, b3, wh, bh)

    out = fused_out.astype(jnp.float32)              # bf16 writeback -> f32 for the loss
    logits, off = [], 0
    for ad in action_dims:                           # drop lane padding (cols >= out_dim are 0)
        logits.append(out[:, off:off + ad])
        off += ad
    value = out[:, off:off + 1]                      # (B, 1), matches nn.Linear(hidden, 1)
    return logits, value


# ---------------------------------------------------------------------------
# Deterministic parameter init (mimics torch orthogonal_(gain=sqrt(2)), bias=0)
# NOTE: params imported from a torch checkpoint must be zero-padded the same
# way (padded hidden/head columns and rows exactly zero).
# ---------------------------------------------------------------------------
def _orthogonal(key, fan_in, fan_out, gain):
    # emulate torch.nn.init.orthogonal_ on a (fan_out, fan_in) weight
    rows, cols = fan_out, fan_in
    flat = jax.random.normal(key, (rows, cols), dtype=jnp.float32)
    transposed = rows < cols
    if transposed:
        flat = flat.T
    q, r = jnp.linalg.qr(flat)
    d = jnp.diagonal(r)
    q = q * jnp.where(d >= 0, 1.0, -1.0)   # guard: sign(0) would zero a column
    if transposed:
        q = q.T
    w = gain * q                      # (fan_out, fan_in), torch layout
    return w.T.astype(jnp.float32)    # (fan_in, fan_out) so the kernel does x @ W


def _pad2d(w, rows, cols):
    return jnp.pad(w, ((0, rows - w.shape[0]), (0, cols - w.shape[1])))


def init_params(key, input_size, hidden_size, action_dims,
                *, weight_dtype=jnp.bfloat16):
    gain = float(np.sqrt(2.0))
    h_pad = _round_up(hidden_size, LANE)
    out_dim = sum(action_dims) + 1
    out_pad = _round_up(out_dim, LANE)

    keys = jax.random.split(key, 4 + len(action_dims))

    # w1 keeps the true input width (no feature padding -> no wrapper pad pass)
    w1 = _pad2d(_orthogonal(keys[0], input_size, hidden_size, gain), input_size, h_pad)
    w2 = _pad2d(_orthogonal(keys[1], hidden_size, hidden_size, gain), h_pad, h_pad)
    w3 = _pad2d(_orthogonal(keys[2], hidden_size, hidden_size, gain), h_pad, h_pad)

    head_ws = [_orthogonal(keys[3 + i], hidden_size, ad, gain)
               for i, ad in enumerate(action_dims)]
    critic_w = _orthogonal(keys[3 + len(action_dims)], hidden_size, 1, gain)
    wh = _pad2d(jnp.concatenate(head_ws + [critic_w], axis=1), h_pad, out_pad)

    b1 = jnp.zeros((1, h_pad), jnp.float32)
    b2 = jnp.zeros((1, h_pad), jnp.float32)
    b3 = jnp.zeros((1, h_pad), jnp.float32)
    bh = jnp.zeros((1, out_pad), jnp.float32)        # padded bias cols stay exactly 0

    w1, w2, w3, wh = (w.astype(weight_dtype) for w in (w1, w2, w3, wh))
    return (w1, b1, w2, b2, w3, b3, wh, bh)


# ---------------------------------------------------------------------------
# Pure-JAX references for correctness checking
# ---------------------------------------------------------------------------
def reference_forward(obs, params, action_dims, mm_dtype=None):
    """mm_dtype=None -> same dtype policy as the kernel (incl. bf16-rounded output);
       jnp.float32 -> pure f32 math (original torch-module semantics)."""
    w1, b1, w2, b2, w3, b3, wh, bh = params
    same_as_kernel = mm_dtype is None
    if same_as_kernel:
        mm_dtype = w1.dtype
    B = obs.shape[0]
    x = obs.reshape(B, -1)

    def layer(a, w, b):
        return jnp.dot(a.astype(mm_dtype), w.astype(mm_dtype),
                       preferred_element_type=jnp.float32) + b

    h = jnp.maximum(layer(x, w1, b1), 0.0)
    h = jnp.maximum(layer(h, w2, b2), 0.0)
    h = jnp.maximum(layer(h, w3, b3), 0.0)
    out = layer(h, wh, bh)
    if same_as_kernel:
        out = out.astype(w1.dtype).astype(jnp.float32)   # kernel stores bf16

    logits, off = [], 0
    for ad in action_dims:
        logits.append(out[:, off:off + ad])
        off += ad
    return logits, out[:, off:off + 1]


if __name__ == "__main__":
    # Small shapes consistent with the module's forward:
    #   obs_shape=(4, 16) -> input_size=64, hidden_size=32, action_dims=[3, 5]
    # (config default hidden is 256; a multiple of 128 is what the kernel tiles
    #  for anyway — hidden=32 here just keeps the demo small.)
    batch = 20
    obs_shape = (4, 16)
    hidden_size = 32
    action_dims = [3, 5]
    input_size = int(np.prod(obs_shape))

    key = jax.random.PRNGKey(0)
    k_obs, k_params = jax.random.split(key)

    obs = jax.random.normal(k_obs, (batch,) + obs_shape, dtype=jnp.float32)
    params = init_params(k_params, input_size, hidden_size, action_dims)

    # Run 1 (block_b=16): forces a 2-step batch grid with a ragged, masked last
    # block.  Run 2 (block_b=None): the generation-aware VMEM-budget tile picker.
    for bb in (16, None):
        logits, value = actor_critic_forward(obs, params, action_dims, block_b=bb)
        logits = [jax.block_until_ready(l) for l in logits]
        value = jax.block_until_ready(value)

        # Tight check: same-precision pure-JAX reference (validates the kernel itself).
        ref_logits, ref_value = reference_forward(obs, params, action_dims)
        for l, rl in zip(logits, ref_logits):
            np.testing.assert_allclose(np.asarray(l), np.asarray(rl),
                                       rtol=2e-2, atol=5e-2)
        np.testing.assert_allclose(np.asarray(value), np.asarray(ref_value),
                                   rtol=2e-2, atol=5e-2)

        # Loose check: all-f32 math (semantics of the original torch module,
        # modulo bf16 weight/activation storage).
        f32_logits, f32_value = reference_forward(obs, params, action_dims,
                                                  mm_dtype=jnp.float32)
        for l, rl in zip(logits, f32_logits):
            np.testing.assert_allclose(np.asarray(l), np.asarray(rl),
                                       rtol=1e-1, atol=1e-1)
        np.testing.assert_allclose(np.asarray(value), np.asarray(f32_value),
                                   rtol=1e-1, atol=1e-1)

        assert logits[0].shape == (batch, action_dims[0])
        assert logits[1].shape == (batch, action_dims[1])
        assert value.shape == (batch, 1)

    print("KERNEL_OK")
</pallas_src>

<mosaic_0001>
module attributes {stable_mosaic.version = 11 : i64} {
  func.func @_actor_critic_kernel(%arg0: i32, %arg1: memref<16x64xbf16, #tpu.memory_space<vmem>>, %arg2: memref<64x128xbf16, #tpu.memory_space<vmem>>, %arg3: memref<1x128xf32, #tpu.memory_space<vmem>>, %arg4: memref<128x128xbf16, #tpu.memory_space<vmem>>, %arg5: memref<1x128xf32, #tpu.memory_space<vmem>>, %arg6: memref<128x128xbf16, #tpu.memory_space<vmem>>, %arg7: memref<1x128xf32, #tpu.memory_space<vmem>>, %arg8: memref<128x128xbf16, #tpu.memory_space<vmem>>, %arg9: memref<1x128xf32, #tpu.memory_space<vmem>>, %arg10: memref<16x128xbf16, #tpu.memory_space<vmem>>) attributes {dimension_semantics = [#tpu.dimension_semantics<parallel>], iteration_bounds = array<i64: 2>, scalar_prefetch = 0 : i64, scratch_operands = 0 : i64, tpu.core_type = #tpu.core_type<tc>, window_params = [{transform_indices = @transform_0, window_bounds = array<i64: 16, 64>}, {pipeline_mode = #tpu.pipeline_mode<synchronous>, transform_indices = @transform_1, window_bounds = array<i64: 64, 128>}, {pipeline_mode = #tpu.pipeline_mode<synchronous>, transform_indices = @transform_2, window_bounds = array<i64: 1, 128>}, {pipeline_mode = #tpu.pipeline_mode<synchronous>, transform_indices = @transform_3, window_bounds = array<i64: 128, 128>}, {pipeline_mode = #tpu.pipeline_mode<synchronous>, transform_indices = @transform_4, window_bounds = array<i64: 1, 128>}, {pipeline_mode = #tpu.pipeline_mode<synchronous>, transform_indices = @transform_5, window_bounds = array<i64: 128, 128>}, {pipeline_mode = #tpu.pipeline_mode<synchronous>, transform_indices = @transform_6, window_bounds = array<i64: 1, 128>}, {pipeline_mode = #tpu.pipeline_mode<synchronous>, transform_indices = @transform_7, window_bounds = array<i64: 128, 128>}, {pipeline_mode = #tpu.pipeline_mode<synchronous>, transform_indices = @transform_8, window_bounds = array<i64: 1, 128>}, {transform_indices = @transform_9, window_bounds = array<i64: 16, 128>}]} {
    %c0 = arith.constant 0 : index
    %c0_0 = arith.constant 0 : index
    %0 = vector.load %arg1[%c0, %c0_0] : memref<16x64xbf16, #tpu.memory_space<vmem>>, vector<16x64xbf16>
    %c0_1 = arith.constant 0 : index
    %c0_2 = arith.constant 0 : index
    %1 = vector.load %arg2[%c0_1, %c0_2] : memref<64x128xbf16, #tpu.memory_space<vmem>>, vector<64x128xbf16>
    %cst = arith.constant dense<0.000000e+00> : vector<16x128xf32>
    %2 = tpu.matmul %0, %1, %cst {dimension_numbers = #tpu.dot_dimension_numbers<[1], [0], [0], [1], [0, 0, 1, 1], [], []>} : vector<16x64xbf16>, vector<64x128xbf16>, vector<16x128xf32> -> vector<16x128xf32>
    %c0_3 = arith.constant 0 : index
    %c0_4 = arith.constant 0 : index
    %3 = vector.load %arg3[%c0_3, %c0_4] : memref<1x128xf32, #tpu.memory_space<vmem>>, vector<1x128xf32>
    %4 = vector.broadcast %3 : vector<1x128xf32> to vector<16x128xf32>
    %5 = arith.addf %2, %4 : vector<16x128xf32>
    %cst_5 = arith.constant 0.000000e+00 : f32
    %6 = vector.broadcast %cst_5 : f32 to vector<16x128xf32>
    %7 = arith.maximumf %5, %6 : vector<16x128xf32>
    %8 = arith.truncf %7 : vector<16x128xf32> to vector<16x128xbf16>
    %c0_6 = arith.constant 0 : index
    %c0_7 = arith.constant 0 : index
    %9 = vector.load %arg4[%c0_6, %c0_7] : memref<128x128xbf16, #tpu.memory_space<vmem>>, vector<128x128xbf16>
    %cst_8 = arith.constant dense<0.000000e+00> : vector<16x128xf32>
    %10 = tpu.matmul %8, %9, %cst_8 {dimension_numbers = #tpu.dot_dimension_numbers<[1], [0], [0], [1], [0, 0, 1, 1], [], []>} : vector<16x128xbf16>, vector<128x128xbf16>, vector<16x128xf32> -> vector<16x128xf32>
    %c0_9 = arith.constant 0 : index
    %c0_10 = arith.constant 0 : index
    %11 = vector.load %arg5[%c0_9, %c0_10] : memref<1x128xf32, #tpu.memory_space<vmem>>, vector<1x128xf32>
    %12 = vector.broadcast %11 : vector<1x128xf32> to vector<16x128xf32>
    %13 = arith.addf %10, %12 : vector<16x128xf32>
    %cst_11 = arith.constant 0.000000e+00 : f32
    %14 = vector.broadcast %cst_11 : f32 to vector<16x128xf32>
    %15 = arith.maximumf %13, %14 : vector<16x128xf32>
    %16 = arith.truncf %15 : vector<16x128xf32> to vector<16x128xbf16>
    %c0_12 = arith.constant 0 : index
    %c0_13 = arith.constant 0 : index
    %17 = vector.load %arg6[%c0_12, %c0_13] : memref<128x128xbf16, #tpu.memory_space<vmem>>, vector<128x128xbf16>
    %cst_14 = arith.constant dense<0.000000e+00> : vector<16x128xf32>
    %18 = tpu.matmul %16, %17, %cst_14 {dimension_numbers = #tpu.dot_dimension_numbers<[1], [0], [0], [1], [0, 0, 1, 1], [], []>} : vector<16x128xbf16>, vector<128x128xbf16>, vector<16x128xf32> -> vector<16x128xf32>
    %c0_15 = arith.constant 0 : index
    %c0_16 = arith.constant 0 : index
    %19 = vector.load %arg7[%c0_15, %c0_16] : memref<1x128xf32, #tpu.memory_space<vmem>>, vector<1x128xf32>
    %20 = vector.broadcast %19 : vector<1x128xf32> to vector<16x128xf32>
    %21 = arith.addf %18, %20 : vector<16x128xf32>
    %cst_17 = arith.constant 0.000000e+00 : f32
    %22 = vector.broadcast %cst_17 : f32 to vector<16x128xf32>
    %23 = arith.maximumf %21, %22 : vector<16x128xf32>
    %24 = arith.truncf %23 : vector<16x128xf32> to vector<16x128xbf16>
    %c0_18 = arith.constant 0 : index
    %c0_19 = arith.constant 0 : index
    %25 = vector.load %arg8[%c0_18, %c0_19] : memref<128x128xbf16, #tpu.memory_space<vmem>>, vector<128x128xbf16>
    %cst_20 = arith.constant dense<0.000000e+00> : vector<16x128xf32>
    %26 = tpu.matmul %24, %25, %cst_20 {dimension_numbers = #tpu.dot_dimension_numbers<[1], [0], [0], [1], [0, 0, 1, 1], [], []>} : vector<16x128xbf16>, vector<128x128xbf16>, vector<16x128xf32> -> vector<16x128xf32>
    %c0_21 = arith.constant 0 : index
    %c0_22 = arith.constant 0 : index
    %27 = vector.load %arg9[%c0_21, %c0_22] : memref<1x128xf32, #tpu.memory_space<vmem>>, vector<1x128xf32>
    %28 = vector.broadcast %27 : vector<1x128xf32> to vector<16x128xf32>
    %29 = arith.addf %26, %28 : vector<16x128xf32>
    %30 = arith.truncf %29 : vector<16x128xf32> to vector<16x128xbf16>
    %c0_23 = arith.constant 0 : index
    %c0_24 = arith.constant 0 : index
    %31 = vector.load %arg10[%c0_23, %c0_24] : memref<16x128xbf16, #tpu.memory_space<vmem>>, vector<16x128xbf16>
    tpu.vector_store %arg10[%c0_23, %c0_24], %30 {strides = array<i32>} : memref<16x128xbf16, #tpu.memory_space<vmem>>, vector<16x128xbf16>,
    return
  }
  func.func @transform_0(%arg0: i32) -> (i32, i32) {
    %c0_i32 = arith.constant 0 : i32
    %c0_i32_0 = arith.constant 0 : i32
    return %arg0, %c0_i32 : i32, i32
  }
  func.func @transform_1(%arg0: i32) -> (i32, i32) {
    %c0_i32 = arith.constant 0 : i32
    %c0_i32_0 = arith.constant 0 : i32
    %c0_i32_1 = arith.constant 0 : i32
    return %c0_i32, %c0_i32_0 : i32, i32
  }
  func.func @transform_2(%arg0: i32) -> (i32, i32) {
    %c0_i32 = arith.constant 0 : i32
    %c0_i32_0 = arith.constant 0 : i32
    %c0_i32_1 = arith.constant 0 : i32
    return %c0_i32, %c0_i32_0 : i32, i32
  }
  func.func @transform_3(%arg0: i32) -> (i32, i32) {
    %c0_i32 = arith.constant 0 : i32
    %c0_i32_0 = arith.constant 0 : i32
    %c0_i32_1 = arith.constant 0 : i32
    return %c0_i32, %c0_i32_0 : i32, i32
  }
  func.func @transform_4(%arg0: i32) -> (i32, i32) {
    %c0_i32 = arith.constant 0 : i32
    %c0_i32_0 = arith.constant 0 : i32
    %c0_i32_1 = arith.constant 0 : i32
    return %c0_i32, %c0_i32_0 : i32, i32
  }
  func.func @transform_5(%arg0: i32) -> (i32, i32) {
    %c0_i32 = arith.constant 0 : i32
    %c0_i32_0 = arith.constant 0 : i32
    %c0_i32_1 = arith.constant 0 : i32
    return %c0_i32, %c0_i32_0 : i32, i32
  }
  func.func @transform_6(%arg0: i32) -> (i32, i32) {
    %c0_i32 = arith.constant 0 : i32
    %c0_i32_0 = arith.constant 0 : i32
    %c0_i32_1 = arith.constant 0 : i32
    return %c0_i32, %c0_i32_0 : i32, i32
  }
  func.func @transform_7(%arg0: i32) -> (i32, i32) {
    %c0_i32 = arith.constant 0 : i32
    %c0_i32_0 = arith.constant 0 : i32
    %c0_i32_1 = arith.constant 0 : i32
    return %c0_i32, %c0_i32_0 : i32, i32
  }
  func.func @transform_8(%arg0: i32) -> (i32, i32) {
    %c0_i32 = arith.constant 0 : i32
    %c0_i32_0 = arith.constant 0 : i32
    %c0_i32_1 = arith.constant 0 : i32
    return %c0_i32, %c0_i32_0 : i32, i32
  }
  func.func @transform_9(%arg0: i32) -> (i32, i32) {
    %c0_i32 = arith.constant 0 : i32
    %c0_i32_0 = arith.constant 0 : i32
    return %arg0, %c0_i32 : i32, i32
  }
}

</mosaic_0001>

<llo_original>
// kernel: tpu_custom_call.1
$region0: #{tpu_custom_call.1}
  #allocation0 [shape = 'u32[]', space=smem, size = 0x4, offset = 0x4, fixed_abs, tag = 'smem constant byte address 0x4 - core index']
  #allocation1 [shape = 'u32[144,128]{1,0:T(1,128)}', space=vmem, size = 0x12000, scoped, tag = 'internal scratch']
  %s0 = inlined_call_operand.hbm [shape: bf16[20,64], index: 0, kind: input, shape index: {}]
  %s1 = inlined_call_operand.hbm [shape: bf16[64,128], index: 1, kind: input, shape index: {}]
  %s2 = inlined_call_operand.vmem [shape: f32[1,128], index: 2, kind: input, shape index: {}]
  %s3 = inlined_call_operand.hbm [shape: bf16[128,128], index: 3, kind: input, shape index: {}]
  %s4 = inlined_call_operand.vmem [shape: f32[1,128], index: 4, kind: input, shape index: {}]
  %s5 = inlined_call_operand.hbm [shape: bf16[128,128], index: 5, kind: input, shape index: {}]
  %s6 = inlined_call_operand.vmem [shape: f32[1,128], index: 6, kind: input, shape index: {}]
  %s7 = inlined_call_operand.hbm [shape: bf16[128,128], index: 7, kind: input, shape index: {}]
  %s8 = inlined_call_operand.vmem [shape: f32[1,128], index: 8, kind: input, shape index: {}]
  %s9 = inlined_call_operand.hbm [shape: bf16[20,128], index: 9, kind: output, shape index: {}]
  %s10 = sld [smem:[#allocation0]]
  $region89: #{tpu_custom_call.1} parent=0
    _
  %s12 = ssub.s32 1, %s10
  %s13 = scalar_select 0, %s12, %s10
  $region1: #{tpu_custom_call.1} parent=0
    #allocation2 [shape = 'u8[8192]{0}', space=vmem, size = 0x2000, scoped, tag = 'input window, operand 0']
    #allocation3 [shape = 's32[2]{0}', space=sflag, size = 0x8, scoped, tag = 'scoped memory for tpu_custom_call.1']
    #allocation4 [shape = 's32[2]{0}', space=sflag, size = 0x8, scoped, tag = 'scoped memory for tpu_custom_call.1']
    #allocation5 [shape = 'u8[16384]{0}', space=vmem, size = 0x4000, scoped, tag = 'input window, operand 1, single buffered']
    #allocation6 [shape = 's32[1]{0}', space=sflag, size = 0x4, scoped, tag = 'scoped memory for tpu_custom_call.1']
    #allocation7 [shape = 'u8[32768]{0}', space=vmem, size = 0x8000, scoped, tag = 'input window, operand 3, single buffered']
    #allocation8 [shape = 'u8[32768]{0}', space=vmem, size = 0x8000, scoped, tag = 'input window, operand 5, single buffered']
    #allocation9 [shape = 's32[1]{0}', space=sflag, size = 0x4, scoped, tag = 'scoped memory for tpu_custom_call.1']
    #allocation10 [shape = 'u8[32768]{0}', space=vmem, size = 0x8000, scoped, tag = 'input window, operand 7, single buffered']
    #allocation11 [shape = 'u8[8192]{0}', space=vmem, size = 0x2000, scoped, tag = 'output window, operand 0']
    %14 = vsyncpa [#allocation3], 0
    %s15 = scalar_lea.sflag [#allocation3], 1
    %16 = vsyncpa %s15, 0
    %17 = vsyncpa [#allocation6], 0
    %18 = vsyncpa [#allocation9], 0
    %19 = vsyncpa [#allocation4], 0
    %s20 = scalar_lea.sflag [#allocation4], 1
    %21 = vsyncpa %s20, 0
    loop: start=0, step=1, limit=4
    $region2: #{tpu_custom_call.1} parent=1 // loop_pre_header
      _
    $region3: #{tpu_custom_call.1} parent=1 // loop_header
      %s23 = sphi 0, %s27
      %p24 = scmp.ge.s32.totalorder %s23, 4
      %s33 = sphi 0, %s35
      %s36 = sphi 0, %s33
      %s37 = sphi 0, %s36
      %s53 = sphi 0, %s37
      %s57 = sphi 0, %s57
      %s59 = sphi 0, %s57
      %s60 = sphi 0, %s59
      %s74 = sphi 0, %s60
      %s78 = sphi 0, %s78
      %s80 = sphi 0, %s78
      %s81 = sphi 0, %s80
      %s95 = sphi 0, %s81
      %s99 = sphi 0, %s99
      %s101 = sphi 0, %s99
      %s102 = sphi 0, %s101
      %s116 = sphi 0, %s102
      %s120 = sphi 0, %s120
      %s122 = sphi 0, %s120
      %s123 = sphi 0, %s122
      %s137 = sphi 0, %s123
      %s141 = sphi 0, %s141
      %s143 = sphi 0, %s141
      %s144 = sphi 0, %s143
      %s158 = sphi 0, %s144
      %s162 = sphi 0, %s162
      %s164 = sphi 0, %s162
      %s165 = sphi 0, %s164
      %s179 = sphi 0, %s165
      %s183 = sphi 0, %s183
      %s185 = sphi 0, %s183
      %s186 = sphi 0, %s185
      %s200 = sphi 0, %s186
      %s204 = sphi 0, %s204
      %s206 = sphi 0, %s204
      %s207 = sphi 0, %s206
      %s221 = sphi 0, %s207
      %s227 = sphi 0, %s229
      %s230 = sphi 0, %s227
      %s231 = sphi 0, %s230
      %s247 = sphi 0, %s231
    $region4: #{tpu_custom_call.1} parent=1 // loop_header_branch
      %26 = sbr.rel (%p24) target = $region8
    $region5: #{tpu_custom_call.1} parent=1 // loop_body
      %s28 = ssub.s32 %s23, 1
      %s29 = ssub.s32 %s23, 2
      %s30 = sadd.s32 %s23, 1
      %s31 = ssub.s32 %s23, %s30
      %p32 = scmp.eq.s32.totalorder %s31, 0
      %s34 = sadd.s32 %s33, 1
      %s35 = scalar_select %p32, %s33, %s34
      %p38 = pneg %p32
      %p39 = scmp.eq.s32.totalorder %s23, 1
      %p40 = por %p38, %p39
      %p41 = scmp.ne.s32.totalorder %s33, %s36
      %p42 = scmp.eq.s32.totalorder %s23, 0
      %p43 = por %p41, %p42
      %p44 = scmp.ne.s32.totalorder %s33, %s36
      %p45 = scmp.eq.s32.totalorder %s28, 1
      %p46 = por %p44, %p45
      %p47 = scmp.ne.s32.totalorder %s36, %s37
      %p48 = scmp.eq.s32.totalorder %s28, 0
      %p49 = por %p47, %p48
      %p50 = scmp.ne.s32.totalorder %s36, %s37
      %p51 = scmp.eq.s32.totalorder %s29, 1
      %p52 = por %p50, %p51
      %p54 = scmp.ne.s32.totalorder %s37, %s53
      %p55 = scmp.eq.s32.totalorder %s29, 0
      %p56 = por %p54, %p55
      %s58 = sadd.s32 %s57, 1
      %p61 = scmp.eq.s32.totalorder %s23, 1
      %p62 = scmp.ne.s32.totalorder %s57, %s59
      %p63 = scmp.eq.s32.totalorder %s23, 0
      %p64 = por %p62, %p63
      %p65 = scmp.ne.s32.totalorder %s57, %s59
      %p66 = scmp.eq.s32.totalorder %s28, 1
      %p67 = por %p65, %p66
      %p68 = scmp.ne.s32.totalorder %s59, %s60
      %p69 = scmp.eq.s32.totalorder %s28, 0
      %p70 = por %p68, %p69
      %p71 = scmp.ne.s32.totalorder %s59, %s60
      %p72 = scmp.eq.s32.totalorder %s29, 1
      %p73 = por %p71, %p72
      %p75 = scmp.ne.s32.totalorder %s60, %s74
      %p76 = scmp.eq.s32.totalorder %s29, 0
      %p77 = por %p75, %p76
      %s79 = sadd.s32 %s78, 1
      %p82 = scmp.eq.s32.totalorder %s23, 1
      %p83 = scmp.ne.s32.totalorder %s78, %s80
      %p84 = scmp.eq.s32.totalorder %s23, 0
      %p85 = por %p83, %p84
      %p86 = scmp.ne.s32.totalorder %s78, %s80
      %p87 = scmp.eq.s32.totalorder %s28, 1
      %p88 = por %p86, %p87
      %p89 = scmp.ne.s32.totalorder %s80, %s81
      %p90 = scmp.eq.s32.totalorder %s28, 0
      %p91 = por %p89, %p90
      %p92 = scmp.ne.s32.totalorder %s80, %s81
      %p93 = scmp.eq.s32.totalorder %s29, 1
      %p94 = por %p92, %p93
      %p96 = scmp.ne.s32.totalorder %s81, %s95
      %p97 = scmp.eq.s32.totalorder %s29, 0
      %p98 = por %p96, %p97
      %s100 = sadd.s32 %s99, 1
      %p103 = scmp.eq.s32.totalorder %s23, 1
      %p104 = scmp.ne.s32.totalorder %s99, %s101
      %p105 = scmp.eq.s32.totalorder %s23, 0
      %p106 = por %p104, %p105
      %p107 = scmp.ne.s32.totalorder %s99, %s101
      %p108 = scmp.eq.s32.totalorder %s28, 1
      %p109 = por %p107, %p108
      %p110 = scmp.ne.s32.totalorder %s101, %s102
      %p111 = scmp.eq.s32.totalorder %s28, 0
      %p112 = por %p110, %p111
      %p113 = scmp.ne.s32.totalorder %s101, %s102
      %p114 = scmp.eq.s32.totalorder %s29, 1
      %p115 = por %p113, %p114
      %p117 = scmp.ne.s32.totalorder %s102, %s116
      %p118 = scmp.eq.s32.totalorder %s29, 0
      %p119 = por %p117, %p118
      %s121 = sadd.s32 %s120, 1
      %p124 = scmp.eq.s32.totalorder %s23, 1
      %p125 = scmp.ne.s32.totalorder %s120, %s122
      %p126 = scmp.eq.s32.totalorder %s23, 0
      %p127 = por %p125, %p126
      %p128 = scmp.ne.s32.totalorder %s120, %s122
      %p129 = scmp.eq.s32.totalorder %s28, 1
      %p130 = por %p128, %p129
      %p131 = scmp.ne.s32.totalorder %s122, %s123
      %p132 = scmp.eq.s32.totalorder %s28, 0
      %p133 = por %p131, %p132
      %p134 = scmp.ne.s32.totalorder %s122, %s123
      %p135 = scmp.eq.s32.totalorder %s29, 1
      %p136 = por %p134, %p135
      %p138 = scmp.ne.s32.totalorder %s123, %s137
      %p139 = scmp.eq.s32.totalorder %s29, 0
      %p140 = por %p138, %p139
      %s142 = sadd.s32 %s141, 1
      %p145 = scmp.eq.s32.totalorder %s23, 1
      %p146 = scmp.ne.s32.totalorder %s141, %s143
      %p147 = scmp.eq.s32.totalorder %s23, 0
      %p148 = por %p146, %p147
      %p149 = scmp.ne.s32.totalorder %s141, %s143
      %p150 = scmp.eq.s32.totalorder %s28, 1
      %p151 = por %p149, %p150
      %p152 = scmp.ne.s32.totalorder %s143, %s144
      %p153 = scmp.eq.s32.totalorder %s28, 0
      %p154 = por %p152, %p153
      %p155 = scmp.ne.s32.totalorder %s143, %s144
      %p156 = scmp.eq.s32.totalorder %s29, 1
      %p157 = por %p155, %p156
      %p159 = scmp.ne.s32.totalorder %s144, %s158
      %p160 = scmp.eq.s32.totalorder %s29, 0
      %p161 = por %p159, %p160
      %s163 = sadd.s32 %s162, 1
      %p166 = scmp.eq.s32.totalorder %s23, 1
      %p167 = scmp.ne.s32.totalorder %s162, %s164
      %p168 = scmp.eq.s32.totalorder %s23, 0
      %p169 = por %p167, %p168
      %p170 = scmp.ne.s32.totalorder %s162, %s164
      %p171 = scmp.eq.s32.totalorder %s28, 1
      %p172 = por %p170, %p171
      %p173 = scmp.ne.s32.totalorder %s164, %s165
      %p174 = scmp.eq.s32.totalorder %s28, 0
      %p175 = por %p173, %p174
      %p176 = scmp.ne.s32.totalorder %s164, %s165
      %p177 = scmp.eq.s32.totalorder %s29, 1
      %p178 = por %p176, %p177
      %p180 = scmp.ne.s32.totalorder %s165, %s179
      %p181 = scmp.eq.s32.totalorder %s29, 0
      %p182 = por %p180, %p181
      %s184 = sadd.s32 %s183, 1
      %p187 = scmp.eq.s32.totalorder %s23, 1
      %p188 = scmp.ne.s32.totalorder %s183, %s185
      %p189 = scmp.eq.s32.totalorder %s23, 0
      %p190 = por %p188, %p189
      %p191 = scmp.ne.s32.totalorder %s183, %s185
      %p192 = scmp.eq.s32.totalorder %s28, 1
      %p193 = por %p191, %p192
      %p194 = scmp.ne.s32.totalorder %s185, %s186
      %p195 = scmp.eq.s32.totalorder %s28, 0
      %p196 = por %p194, %p195
      %p197 = scmp.ne.s32.totalorder %s185, %s186
      %p198 = scmp.eq.s32.totalorder %s29, 1
      %p199 = por %p197, %p198
      %p201 = scmp.ne.s32.totalorder %s186, %s200
      %p202 = scmp.eq.s32.totalorder %s29, 0
      %p203 = por %p201, %p202
      %s205 = sadd.s32 %s204, 1
      %p208 = scmp.eq.s32.totalorder %s23, 1
      %p209 = scmp.ne.s32.totalorder %s204, %s206
      %p210 = scmp.eq.s32.totalorder %s23, 0
      %p211 = por %p209, %p210
      %p212 = scmp.ne.s32.totalorder %s204, %s206
      %p213 = scmp.eq.s32.totalorder %s28, 1
      %p214 = por %p212, %p213
      %p215 = scmp.ne.s32.totalorder %s206, %s207
      %p216 = scmp.eq.s32.totalorder %s28, 0
      %p217 = por %p215, %p216
      %p218 = scmp.ne.s32.totalorder %s206, %s207
      %p219 = scmp.eq.s32.totalorder %s29, 1
      %p220 = por %p218, %p219
      %p222 = scmp.ne.s32.totalorder %s207, %s221
      %p223 = scmp.eq.s32.totalorder %s29, 0
      %p224 = por %p222, %p223
      %s225 = ssub.s32 %s23, %s30
      %p226 = scmp.eq.s32.totalorder %s225, 0
      %s228 = sadd.s32 %s227, 1
      %s229 = scalar_select %p226, %s227, %s228
      %p232 = pneg %p226
      %p233 = scmp.eq.s32.totalorder %s23, 1
      %p234 = por %p232, %p233
      %p235 = scmp.ne.s32.totalorder %s227, %s230
      %p236 = scmp.eq.s32.totalorder %s23, 0
      %p237 = por %p235, %p236
      %p238 = scmp.ne.s32.totalorder %s227, %s230
      %p239 = scmp.eq.s32.totalorder %s28, 1
      %p240 = por %p238, %p239
      %p241 = scmp.ne.s32.totalorder %s230, %s231
      %p242 = scmp.eq.s32.totalorder %s28, 0
      %p243 = por %p241, %p242
      %p244 = scmp.ne.s32.totalorder %s230, %s231
      %p245 = scmp.eq.s32.totalorder %s29, 1
      %p246 = por %p244, %p245
      %p248 = scmp.ne.s32.totalorder %s231, %s247
      %p249 = scmp.eq.s32.totalorder %s29, 0
      %p250 = por %p248, %p249
      %p251 = scmp.le.s32.totalorder 1, %s23
      %p252 = scmp.lt.s32.totalorder %s23, 3
      %p253 = pnand %p251, %p252
      %p254 = pneg %p253
      // Predicated region
      $region9: #{tpu_custom_call.1} parent=5 // pred_check
        _
      $region10: #{tpu_custom_call.1} parent=5 // pred_check_branch
        %256 = sbr.rel (%p253) target = $region12
      $region11: #{tpu_custom_call.1} parent=5 // pred_region
        %s257 = ssub.s32 %s23, 1
        // Predicated region
        $region13: #{tpu_custom_call.1} parent=11 // pred_check
          %p258 = pneg %p70
        $region14: #{tpu_custom_call.1} parent=11 // pred_check_branch
          %260 = sbr.rel (%p258) target = $region16
        $region15: #{tpu_custom_call.1} parent=11 // pred_region
          %s262 = ssub.s32 512, 512
          %263 = vsyncadd [#allocation6], %s262
          %s264 = sshll.u32 [#allocation5], 4
          %s265 = int_to_ptr.vmem [resolvable:$true] %s264
          %270 = dma.hbm_to_vmem [thread:$0]  %s1, 512, %s265, [#allocation6], 64, 64, 4
        $region16: #{tpu_custom_call.1} parent=11 // pred_fallthru
          _
        // Predicated region
        $region17: #{tpu_custom_call.1} parent=11 // pred_check
          %p271 = pneg %p91
        $region18: #{tpu_custom_call.1} parent=11 // pred_check_branch
          %273 = sbr.rel (%p271) target = $region20
        $region19: #{tpu_custom_call.1} parent=11 // pred_region
          _
        $region20: #{tpu_custom_call.1} parent=11 // pred_fallthru
          _
        // Predicated region
        $region21: #{tpu_custom_call.1} parent=11 // pred_check
          %p274 = pneg %p112
        $region22: #{tpu_custom_call.1} parent=11 // pred_check_branch
          %276 = sbr.rel (%p274) target = $region24
        $region23: #{tpu_custom_call.1} parent=11 // pred_region
          %s278 = ssub.s32 1024, 1024
          %279 = vsyncadd [#allocation6], %s278
          %s280 = sshll.u32 [#allocation7], 4
          %s281 = int_to_ptr.vmem [resolvable:$true] %s280
          %286 = dma.hbm_to_vmem [thread:$0]  %s3, 1024, %s281, [#allocation6], 64, 64, 4
        $region24: #{tpu_custom_call.1} parent=11 // pred_fallthru
          _
        // Predicated region
        $region25: #{tpu_custom_call.1} parent=11 // pred_check
          %p287 = pneg %p133
        $region26: #{tpu_custom_call.1} parent=11 // pred_check_branch
          %289 = sbr.rel (%p287) target = $region28
        $region27: #{tpu_custom_call.1} parent=11 // pred_region
          _
        $region28: #{tpu_custom_call.1} parent=11 // pred_fallthru
          _
        // Predicated region
        $region29: #{tpu_custom_call.1} parent=11 // pred_check
          %p290 = pneg %p154
        $region30: #{tpu_custom_call.1} parent=11 // pred_check_branch
          %292 = sbr.rel (%p290) target = $region32
        $region31: #{tpu_custom_call.1} parent=11 // pred_region
          %s294 = ssub.s32 1024, 1024
          %295 = vsyncadd [#allocation9], %s294
          %s296 = sshll.u32 [#allocation8], 4
          %s297 = int_to_ptr.vmem [resolvable:$true] %s296
          %302 = dma.hbm_to_vmem [thread:$0]  %s5, 1024, %s297, [#allocation9], 64, 64, 4
        $region32: #{tpu_custom_call.1} parent=11 // pred_fallthru
          _
        // Predicated region
        $region33: #{tpu_custom_call.1} parent=11 // pred_check
          %p303 = pneg %p175
        $region34: #{tpu_custom_call.1} parent=11 // pred_check_branch
          %305 = sbr.rel (%p303) target = $region36
        $region35: #{tpu_custom_call.1} parent=11 // pred_region
          _
        $region36: #{tpu_custom_call.1} parent=11 // pred_fallthru
          _
        // Predicated region
        $region37: #{tpu_custom_call.1} parent=11 // pred_check
          %p306 = pneg %p196
        $region38: #{tpu_custom_call.1} parent=11 // pred_check_branch
          %308 = sbr.rel (%p306) target = $region40
        $region39: #{tpu_custom_call.1} parent=11 // pred_region
          %s310 = ssub.s32 1024, 1024
          %311 = vsyncadd [#allocation9], %s310
          %s312 = sshll.u32 [#allocation10], 4
          %s313 = int_to_ptr.vmem [resolvable:$true] %s312
          %318 = dma.hbm_to_vmem [thread:$0]  %s7, 1024, %s313, [#allocation9], 64, 64, 4
        $region40: #{tpu_custom_call.1} parent=11 // pred_fallthru
          _
        // Predicated region
        $region41: #{tpu_custom_call.1} parent=11 // pred_check
          %p319 = pneg %p217
        $region42: #{tpu_custom_call.1} parent=11 // pred_check_branch
          %321 = sbr.rel (%p319) target = $region44
        $region43: #{tpu_custom_call.1} parent=11 // pred_region
          _
        $region44: #{tpu_custom_call.1} parent=11 // pred_fallthru
          _
      $region12: #{tpu_custom_call.1} parent=5 // pred_fallthru
        _
      %p322 = scmp.lt.s32.totalorder %s23, 2
      // Predicated region
      $region45: #{tpu_custom_call.1} parent=5 // pred_check
        %p323 = pneg %p322
      $region46: #{tpu_custom_call.1} parent=5 // pred_check_branch
        %325 = sbr.rel (%p323) target = $region48
      $region47: #{tpu_custom_call.1} parent=5 // pred_region
        // Predicated region
        $region49: #{tpu_custom_call.1} parent=47 // pred_check
          %p326 = pneg %p43
        $region50: #{tpu_custom_call.1} parent=47 // pred_check_branch
          %328 = sbr.rel (%p326) target = $region52
        $region51: #{tpu_custom_call.1} parent=47 // pred_region
          %s329 = sand.u32 %s33, 1
          %s330 = scalar_lea.sflag [#allocation3], %s329
          %s331 = sand.u32 %s33, 1
          %s332 = smul.addr %s331, 8
          %s333 = scalar_lea.vmem [#allocation2], %s332
          %s334 = smul.u32 2, %s23
          %s335 = ssub.s32 3, %s334
          %p336 = scmp.lt.s32.totalorder %s335, 2
          %s337 = scalar_select %p336, %s335, 2
          %s338 = smul.u32 64, %s337
          %s340 = ssub.s32 128, %s338
          %341 = vsyncadd %s330, %s340
          %p342 = scmp.ne.s32.totalorder 0, %s338
          %s343 = smul.addr %s334, 64
          %s344 = scalar_lea.hbm %s0, %s343
          %s345 = smul.u32 4, %s337
          %s346 = sshll.u32 %s333, 4
          %s347 = int_to_ptr.vmem [resolvable:$true] %s346
          %s348 = sshll.u32 %s345, 4
          %352 = dma.hbm_to_vmem [thread:$0]  (%p342), %s344, %s348, %s347, %s330, 64, 64, 4
        $region52: #{tpu_custom_call.1} parent=47 // pred_fallthru
          _
      $region48: #{tpu_custom_call.1} parent=5 // pred_fallthru
        _
      %p353 = scmp.le.s32.totalorder 1, %s23
      %p354 = scmp.lt.s32.totalorder %s23, 3
      %p355 = pnand %p353, %p354
      %p356 = pneg %p355
      // Predicated region
      $region53: #{tpu_custom_call.1} parent=5 // pred_check
        _
      $region54: #{tpu_custom_call.1} parent=5 // pred_check_branch
        %358 = sbr.rel (%p355) target = $region56
      $region55: #{tpu_custom_call.1} parent=5 // pred_region
        %s359 = ssub.s32 %s23, 1
        %s360 = sand.u32 %s36, 1
        %s361 = scalar_lea.sflag [#allocation3], %s360
        %s362 = sand.u32 %s36, 1
        %s363 = smul.addr %s362, 8
        %s364 = scalar_lea.vmem [#allocation2], %s363
        // Predicated region
        $region57: #{tpu_custom_call.1} parent=55 // pred_check
          %p365 = pneg %p49
        $region58: #{tpu_custom_call.1} parent=55 // pred_check_branch
          %367 = sbr.rel (%p365) target = $region60
        $region59: #{tpu_custom_call.1} parent=55 // pred_region
          %368 = dma.done %s361, 128
        $region60: #{tpu_custom_call.1} parent=55 // pred_fallthru
          _
        // Predicated region
        $region61: #{tpu_custom_call.1} parent=55 // pred_check
          %p369 = pneg %p70
        $region62: #{tpu_custom_call.1} parent=55 // pred_check_branch
          %371 = sbr.rel (%p369) target = $region64
        $region63: #{tpu_custom_call.1} parent=55 // pred_region
          %372 = dma.done [#allocation6], 512
        $region64: #{tpu_custom_call.1} parent=55 // pred_fallthru
          _
        // Predicated region
        $region65: #{tpu_custom_call.1} parent=55 // pred_check
          %p373 = pneg %p112
        $region66: #{tpu_custom_call.1} parent=55 // pred_check_branch
          %375 = sbr.rel (%p373) target = $region68
        $region67: #{tpu_custom_call.1} parent=55 // pred_region
          %376 = dma.done [#allocation6], 1024
        $region68: #{tpu_custom_call.1} parent=55 // pred_fallthru
          _
        // Predicated region
        $region69: #{tpu_custom_call.1} parent=55 // pred_check
          %p377 = pneg %p154
        $region70: #{tpu_custom_call.1} parent=55 // pred_check_branch
          %379 = sbr.rel (%p377) target = $region72
        $region71: #{tpu_custom_call.1} parent=55 // pred_region
          %380 = dma.done [#allocation9], 1024
        $region72: #{tpu_custom_call.1} parent=55 // pred_fallthru
          _
        // Predicated region
        $region73: #{tpu_custom_call.1} parent=55 // pred_check
          %p381 = pneg %p196
        $region74: #{tpu_custom_call.1} parent=55 // pred_check_branch
          %383 = sbr.rel (%p381) target = $region76
        $region75: #{tpu_custom_call.1} parent=55 // pred_region
          %384 = dma.done [#allocation9], 1024
        $region76: #{tpu_custom_call.1} parent=55 // pred_fallthru
          _
        %s385 = sand.u32 %s36, 1
        %s386 = scalar_lea.sflag [#allocation3], %s385
        %s387 = sand.u32 %s36, 1
        %s388 = smul.addr %s387, 8
        %s389 = scalar_lea.vmem [#allocation2], %s388
        %p390 = pneg %p49
        %p391 = pneg %p46
        %p392 = pneg %p70
        %p393 = pneg %p67
        %p394 = pneg %p91
        %p395 = pneg %p88
        %p396 = pneg %p112
        %p397 = pneg %p109
        %p398 = pneg %p133
        %p399 = pneg %p130
        %p400 = pneg %p154
        %p401 = pneg %p151
        %p402 = pneg %p175
        %p403 = pneg %p172
        %p404 = pneg %p196
        %p405 = pneg %p193
        %p406 = pneg %p217
        %p407 = pneg %p214
        %p408 = pneg %p243
        %p409 = pneg %p240
        %s410 = sand.u32 %s230, 1
        %s411 = scalar_lea.sflag [#allocation4], %s410
        %s412 = sand.u32 %s230, 1
        %s413 = smul.addr %s412, 8
        %s414 = scalar_lea.vmem [#allocation11], %s413
        %s415 = smul.u32 2, %s28
        %s416 = ssub.s32 3, %s415
        %p417 = scmp.lt.s32.totalorder %s416, 2
        %s418 = scalar_select %p417, %s416, 2
        %s419 = smul.u32 64, %s418
        %s420 = smul.u32 2, %s28
        %s421 = ssub.s32 3, %s420
        %p422 = scmp.lt.s32.totalorder %s421, 2
        %s423 = scalar_select %p422, %s421, 2
        %s424 = smul.u32 64, %s423
        %v426 = vld [vmem:[%s364] sm:$0xf]
        %v427 = vld [vmem:[%s364 + $0x4] sm:$0xf]
        %v428 = vld [vmem:[#allocation5] sm:$0xf]
        %v429 = vld [vmem:[#allocation5 + $0x4] sm:$0xf]
        %v430 = vld [vmem:[#allocation5 + $0x8] sm:$0xf]
        %v431 = vld [vmem:[#allocation5 + $0xc] sm:$0xf]
        %v432 = vld [vmem:[#allocation5 + $0x10] sm:$0xf]
        %v433 = vld [vmem:[#allocation5 + $0x14] sm:$0xf]
        %v434 = vld [vmem:[#allocation5 + $0x18] sm:$0xf]
        %v435 = vld [vmem:[#allocation5 + $0x1c] sm:$0xf]
        %v436 = vld [vmem:[%s2] sm:$0x1]
        %v438 = vlaneseq
        %v439 = vshrl.u32 %v438, 7
        %v440 = vsub.s32 0, %v439
        %v441 = vrot.slane %v436, %v440
        %v445 = vunpack.c.l.b16 %v426
        %v446 = vunpack.c.l.b16 %v427
        %v447 = vpack.c.b16 %v446, %v445
        %v456 = vunpack.c.l.b16 %v428
        %v457 = vunpack.c.l.b16 %v429
        %v458 = vunpack.c.l.b16 %v430
        %v459 = vunpack.c.l.b16 %v431
        %v460 = vunpack.c.l.b16 %v432
        %v461 = vunpack.c.l.b16 %v433
        %v462 = vunpack.c.l.b16 %v434
        %v463 = vunpack.c.l.b16 %v435
        %v464 = vpack.c.b16 %v457, %v456
        %v465 = vpack.c.b16 %v459, %v458
        %v466 = vpack.c.b16 %v461, %v460
        %v467 = vpack.c.b16 %v463, %v462
        %vm472 = vcmask 523264
        %v474 = vsel %vm472, %v447, 0
        %476 = vmatprep.subr.bf16.mxu0 0
        %477 = vmatpush1.bf16.msra.mxu0 0
        %478 = vmatprep.subr.bf16.mxu0 0
        %479 = vmatpush1.bf16.msra.mxu0 0
        %480 = vmatprep.subr.bf16.mxu0 0
        %481 = vmatpush1.bf16.msra.mxu0 0
        %482 = vmatprep.subr.bf16.mxu0 0
        %483 = vmatpush1.bf16.msra.mxu0 0
        %484 = vmatprep.subr.bf16.mxu0 0
        %485 = vmatpush1.bf16.msra.mxu0 %v467
        %486 = vmatprep.subr.bf16.mxu0 0
        %487 = vmatpush1.bf16.msra.mxu0 %v466
        %488 = vmatprep.subr.bf16.mxu0 0
        %489 = vmatpush1.bf16.msra.mxu0 %v465
        %490 = vmatprep.subr.bf16.mxu0 0
        %491 = vmatpush1.bf16.msra.mxu0 %v464
        %492 = vmatprep.subr.bf16.mxu0 0
        %493 = vmatpush2.bf16.msra.mxu0 0
        %494 = vmatprep.subr.bf16.mxu0 0
        %495 = vmatpush2.bf16.msra.mxu0 0
        %496 = vmatprep.subr.bf16.mxu0 0
        %497 = vmatpush2.bf16.msra.mxu0 0
        %498 = vmatprep.subr.bf16.mxu0 0
        %499 = vmatpush2.bf16.msra.mxu0 0
        %500 = vmatprep.subr.bf16.mxu0 0
        %501 = vmatpush2.bf16.msra.mxu0 0
        %502 = vmatprep.subr.bf16.mxu0 0
        %503 = vmatpush2.bf16.msra.mxu0 0
        %504 = vmatprep.subr.bf16.mxu0 0
        %505 = vmatpush2.bf16.msra.mxu0 0
        %506 = vmatprep.subr.bf16.mxu0 0
        %507 = vmatpush2.bf16.msra.mxu0 0
        %508 = vmatprep.mubr.bf16.mxu0 0
        %509 = vmatmul.mubr.bf16.gmra.mxu0 %v474
        %v510 = vpop.f32.mrf.mxu0
        %v511 = vadd.f32 %v441, %v510
        %v512 = vpop.f32.mrf.mxu0
        %v513 = vpop.f32.mrf.mxu0
        %v514 = vadd.f32 %v441, %v513
        %v515 = vpop.f32.mrf.mxu0
        %516 = vdwg.mxu0
        %v517 = vmax.f32 %v511, 0.0
        %v518 = vmax.f32 %v514, 0.0
        %v519 = vpack.c.bf16 %v518, %v517
        %v520 = vld [vmem:[#allocation7] sm:$0xf]
        %v521 = vld [vmem:[#allocation7 + $0x4] sm:$0xf]
        %v522 = vld [vmem:[#allocation7 + $0x8] sm:$0xf]
        %v523 = vld [vmem:[#allocation7 + $0xc] sm:$0xf]
        %v524 = vld [vmem:[#allocation7 + $0x10] sm:$0xf]
        %v525 = vld [vmem:[#allocation7 + $0x14] sm:$0xf]
        %v526 = vld [vmem:[#allocation7 + $0x18] sm:$0xf]
        %v527 = vld [vmem:[#allocation7 + $0x1c] sm:$0xf]
        %v528 = vld [vmem:[#allocation7 + $0x20] sm:$0xf]
        %v529 = vld [vmem:[#allocation7 + $0x24] sm:$0xf]
        %v530 = vld [vmem:[#allocation7 + $0x28] sm:$0xf]
        %v531 = vld [vmem:[#allocation7 + $0x2c] sm:$0xf]
        %v532 = vld [vmem:[#allocation7 + $0x30] sm:$0xf]
        %v533 = vld [vmem:[#allocation7 + $0x34] sm:$0xf]
        %v534 = vld [vmem:[#allocation7 + $0x38] sm:$0xf]
        %v535 = vld [vmem:[#allocation7 + $0x3c] sm:$0xf]
        %v536 = vld [vmem:[%s4] sm:$0x1]
        %v538 = vlaneseq
        %v539 = vshrl.u32 %v538, 7
        %v540 = vsub.s32 0, %v539
        %v541 = vrot.slane %v536, %v540
        %v559 = vunpack.c.l.b16 %v520
        %v560 = vunpack.c.l.b16 %v521
        %v561 = vunpack.c.l.b16 %v522
        %v562 = vunpack.c.l.b16 %v523
        %v563 = vunpack.c.l.b16 %v524
        %v564 = vunpack.c.l.b16 %v525
        %v565 = vunpack.c.l.b16 %v526
        %v566 = vunpack.c.l.b16 %v527
        %v567 = vunpack.c.l.b16 %v528
        %v568 = vunpack.c.l.b16 %v529
        %v569 = vunpack.c.l.b16 %v530
        %v570 = vunpack.c.l.b16 %v531
        %v571 = vunpack.c.l.b16 %v532
        %v572 = vunpack.c.l.b16 %v533
        %v573 = vunpack.c.l.b16 %v534
        %v574 = vunpack.c.l.b16 %v535
        %v575 = vpack.c.b16 %v560, %v559
        %v576 = vpack.c.b16 %v562, %v561
        %v577 = vpack.c.b16 %v564, %v563
        %v578 = vpack.c.b16 %v566, %v565
        %v579 = vpack.c.b16 %v568, %v567
        %v580 = vpack.c.b16 %v570, %v569
        %v581 = vpack.c.b16 %v572, %v571
        %v582 = vpack.c.b16 %v574, %v573
        %591 = vmatprep.subr.bf16.mxu0 0
        %592 = vmatpush1.bf16.msra.mxu0 %v582
        %593 = vmatprep.subr.bf16.mxu0 0
        %594 = vmatpush1.bf16.msra.mxu0 %v581
        %595 = vmatprep.subr.bf16.mxu0 0
        %596 = vmatpush1.bf16.msra.mxu0 %v580
        %597 = vmatprep.subr.bf16.mxu0 0
        %598 = vmatpush1.bf16.msra.mxu0 %v579
        %599 = vmatprep.subr.bf16.mxu0 0
        %600 = vmatpush1.bf16.msra.mxu0 %v578
        %601 = vmatprep.subr.bf16.mxu0 0
        %602 = vmatpush1.bf16.msra.mxu0 %v577
        %603 = vmatprep.subr.bf16.mxu0 0
        %604 = vmatpush1.bf16.msra.mxu0 %v576
        %605 = vmatprep.subr.bf16.mxu0 0
        %606 = vmatpush1.bf16.msra.mxu0 %v575
        %607 = vmatprep.subr.bf16.mxu0 0
        %608 = vmatpush2.bf16.msra.mxu0 0
        %609 = vmatprep.subr.bf16.mxu0 0
        %610 = vmatpush2.bf16.msra.mxu0 0
        %611 = vmatprep.subr.bf16.mxu0 0
        %612 = vmatpush2.bf16.msra.mxu0 0
        %613 = vmatprep.subr.bf16.mxu0 0
        %614 = vmatpush2.bf16.msra.mxu0 0
        %615 = vmatprep.subr.bf16.mxu0 0
        %616 = vmatpush2.bf16.msra.mxu0 0
        %617 = vmatprep.subr.bf16.mxu0 0
        %618 = vmatpush2.bf16.msra.mxu0 0
        %619 = vmatprep.subr.bf16.mxu0 0
        %620 = vmatpush2.bf16.msra.mxu0 0
        %621 = vmatprep.subr.bf16.mxu0 0
        %622 = vmatpush2.bf16.msra.mxu0 0
        %623 = vmatprep.mubr.bf16.mxu0 0
        %624 = vmatmul.mubr.bf16.gmra.mxu0 %v519
        %v625 = vpop.f32.mrf.mxu0
        %v626 = vadd.f32 %v541, %v625
        %v627 = vpop.f32.mrf.mxu0
        %v628 = vpop.f32.mrf.mxu0
        %v629 = vadd.f32 %v541, %v628
        %v630 = vpop.f32.mrf.mxu0
        %631 = vdwg.mxu0
        %v632 = vmax.f32 %v626, 0.0
        %v633 = vmax.f32 %v629, 0.0
        %v634 = vpack.c.bf16 %v633, %v632
        %v635 = vld [vmem:[#allocation8] sm:$0xf]
        %v636 = vld [vmem:[#allocation8 + $0x4] sm:$0xf]
        %v637 = vld [vmem:[#allocation8 + $0x8] sm:$0xf]
        %v638 = vld [vmem:[#allocation8 + $0xc] sm:$0xf]
        %v639 = vld [vmem:[#allocation8 + $0x10] sm:$0xf]
        %v640 = vld [vmem:[#allocation8 + $0x14] sm:$0xf]
        %v641 = vld [vmem:[#allocation8 + $0x18] sm:$0xf]
        %v642 = vld [vmem:[#allocation8 + $0x1c] sm:$0xf]
        %v643 = vld [vmem:[#allocation8 + $0x20] sm:$0xf]
        %v644 = vld [vmem:[#allocation8 + $0x24] sm:$0xf]
        %v645 = vld [vmem:[#allocation8 + $0x28] sm:$0xf]
        %v646 = vld [vmem:[#allocation8 + $0x2c] sm:$0xf]
        %v647 = vld [vmem:[#allocation8 + $0x30] sm:$0xf]
        %v648 = vld [vmem:[#allocation8 + $0x34] sm:$0xf]
        %v649 = vld [vmem:[#allocation8 + $0x38] sm:$0xf]
        %v650 = vld [vmem:[#allocation8 + $0x3c] sm:$0xf]
        %v651 = vld [vmem:[%s6] sm:$0x1]
        %v653 = vlaneseq
        %v654 = vshrl.u32 %v653, 7
        %v655 = vsub.s32 0, %v654
        %v656 = vrot.slane %v651, %v655
        %v674 = vunpack.c.l.b16 %v635
        %v675 = vunpack.c.l.b16 %v636
        %v676 = vunpack.c.l.b16 %v637
        %v677 = vunpack.c.l.b16 %v638
        %v678 = vunpack.c.l.b16 %v639
        %v679 = vunpack.c.l.b16 %v640
        %v680 = vunpack.c.l.b16 %v641
        %v681 = vunpack.c.l.b16 %v642
        %v682 = vunpack.c.l.b16 %v643
        %v683 = vunpack.c.l.b16 %v644
        %v684 = vunpack.c.l.b16 %v645
        %v685 = vunpack.c.l.b16 %v646
        %v686 = vunpack.c.l.b16 %v647
        %v687 = vunpack.c.l.b16 %v648
        %v688 = vunpack.c.l.b16 %v649
        %v689 = vunpack.c.l.b16 %v650
        %v690 = vpack.c.b16 %v675, %v674
        %v691 = vpack.c.b16 %v677, %v676
        %v692 = vpack.c.b16 %v679, %v678
        %v693 = vpack.c.b16 %v681, %v680
        %v694 = vpack.c.b16 %v683, %v682
        %v695 = vpack.c.b16 %v685, %v684
        %v696 = vpack.c.b16 %v687, %v686
        %v697 = vpack.c.b16 %v689, %v688
        %706 = vmatprep.subr.bf16.mxu0 0
        %707 = vmatpush1.bf16.msra.mxu0 %v697
        %708 = vmatprep.subr.bf16.mxu0 0
        %709 = vmatpush1.bf16.msra.mxu0 %v696
        %710 = vmatprep.subr.bf16.mxu0 0
        %711 = vmatpush1.bf16.msra.mxu0 %v695
        %712 = vmatprep.subr.bf16.mxu0 0
        %713 = vmatpush1.bf16.msra.mxu0 %v694
        %714 = vmatprep.subr.bf16.mxu0 0
        %715 = vmatpush1.bf16.msra.mxu0 %v693
        %716 = vmatprep.subr.bf16.mxu0 0
        %717 = vmatpush1.bf16.msra.mxu0 %v692
        %718 = vmatprep.subr.bf16.mxu0 0
        %719 = vmatpush1.bf16.msra.mxu0 %v691
        %720 = vmatprep.subr.bf16.mxu0 0
        %721 = vmatpush1.bf16.msra.mxu0 %v690
        %722 = vmatprep.subr.bf16.mxu0 0
        %723 = vmatpush2.bf16.msra.mxu0 0
        %724 = vmatprep.subr.bf16.mxu0 0
        %725 = vmatpush2.bf16.msra.mxu0 0
        %726 = vmatprep.subr.bf16.mxu0 0
        %727 = vmatpush2.bf16.msra.mxu0 0
        %728 = vmatprep.subr.bf16.mxu0 0
        %729 = vmatpush2.bf16.msra.mxu0 0
        %730 = vmatprep.subr.bf16.mxu0 0
        %731 = vmatpush2.bf16.msra.mxu0 0
        %732 = vmatprep.subr.bf16.mxu0 0
        %733 = vmatpush2.bf16.msra.mxu0 0
        %734 = vmatprep.subr.bf16.mxu0 0
        %735 = vmatpush2.bf16.msra.mxu0 0
        %736 = vmatprep.subr.bf16.mxu0 0
        %737 = vmatpush2.bf16.msra.mxu0 0
        %738 = vmatprep.mubr.bf16.mxu0 0
        %739 = vmatmul.mubr.bf16.gmra.mxu0 %v634
        %v740 = vpop.f32.mrf.mxu0
        %v741 = vadd.f32 %v656, %v740
        %v742 = vpop.f32.mrf.mxu0
        %v743 = vpop.f32.mrf.mxu0
        %v744 = vadd.f32 %v656, %v743
        %v745 = vpop.f32.mrf.mxu0
        %746 = vdwg.mxu0
        %v747 = vmax.f32 %v741, 0.0
        %v748 = vmax.f32 %v744, 0.0
        %v749 = vpack.c.bf16 %v748, %v747
        %v750 = vld [vmem:[#allocation10] sm:$0xf]
        %v751 = vld [vmem:[#allocation10 + $0x4] sm:$0xf]
        %v752 = vld [vmem:[#allocation10 + $0x8] sm:$0xf]
        %v753 = vld [vmem:[#allocation10 + $0xc] sm:$0xf]
        %v754 = vld [vmem:[#allocation10 + $0x10] sm:$0xf]
        %v755 = vld [vmem:[#allocation10 + $0x14] sm:$0xf]
        %v756 = vld [vmem:[#allocation10 + $0x18] sm:$0xf]
        %v757 = vld [vmem:[#allocation10 + $0x1c] sm:$0xf]
        %v758 = vld [vmem:[#allocation10 + $0x20] sm:$0xf]
        %v759 = vld [vmem:[#allocation10 + $0x24] sm:$0xf]
        %v760 = vld [vmem:[#allocation10 + $0x28] sm:$0xf]
        %v761 = vld [vmem:[#allocation10 + $0x2c] sm:$0xf]
        %v762 = vld [vmem:[#allocation10 + $0x30] sm:$0xf]
        %v763 = vld [vmem:[#allocation10 + $0x34] sm:$0xf]
        %v764 = vld [vmem:[#allocation10 + $0x38] sm:$0xf]
        %v765 = vld [vmem:[#allocation10 + $0x3c] sm:$0xf]
        %v766 = vld [vmem:[%s8] sm:$0x1]
        %v768 = vlaneseq
        %v769 = vshrl.u32 %v768, 7
        %v770 = vsub.s32 0, %v769
        %v771 = vrot.slane %v766, %v770
        %v789 = vunpack.c.l.b16 %v750
        %v790 = vunpack.c.l.b16 %v751
        %v791 = vunpack.c.l.b16 %v752
        %v792 = vunpack.c.l.b16 %v753
        %v793 = vunpack.c.l.b16 %v754
        %v794 = vunpack.c.l.b16 %v755
        %v795 = vunpack.c.l.b16 %v756
        %v796 = vunpack.c.l.b16 %v757
        %v797 = vunpack.c.l.b16 %v758
        %v798 = vunpack.c.l.b16 %v759
        %v799 = vunpack.c.l.b16 %v760
        %v800 = vunpack.c.l.b16 %v761
        %v801 = vunpack.c.l.b16 %v762
        %v802 = vunpack.c.l.b16 %v763
        %v803 = vunpack.c.l.b16 %v764
        %v804 = vunpack.c.l.b16 %v765
        %v805 = vpack.c.b16 %v790, %v789
        %v806 = vpack.c.b16 %v792, %v791
        %v807 = vpack.c.b16 %v794, %v793
        %v808 = vpack.c.b16 %v796, %v795
        %v809 = vpack.c.b16 %v798, %v797
        %v810 = vpack.c.b16 %v800, %v799
        %v811 = vpack.c.b16 %v802, %v801
        %v812 = vpack.c.b16 %v804, %v803
        %821 = vmatprep.subr.bf16.mxu0 0
        %822 = vmatpush1.bf16.msra.mxu0 %v812
        %823 = vmatprep.subr.bf16.mxu0 0
        %824 = vmatpush1.bf16.msra.mxu0 %v811
        %825 = vmatprep.subr.bf16.mxu0 0
        %826 = vmatpush1.bf16.msra.mxu0 %v810
        %827 = vmatprep.subr.bf16.mxu0 0
        %828 = vmatpush1.bf16.msra.mxu0 %v809
        %829 = vmatprep.subr.bf16.mxu0 0
        %830 = vmatpush1.bf16.msra.mxu0 %v808
        %831 = vmatprep.subr.bf16.mxu0 0
        %832 = vmatpush1.bf16.msra.mxu0 %v807
        %833 = vmatprep.subr.bf16.mxu0 0
        %834 = vmatpush1.bf16.msra.mxu0 %v806
        %835 = vmatprep.subr.bf16.mxu0 0
        %836 = vmatpush1.bf16.msra.mxu0 %v805
        %837 = vmatprep.subr.bf16.mxu0 0
        %838 = vmatpush2.bf16.msra.mxu0 0
        %839 = vmatprep.subr.bf16.mxu0 0
        %840 = vmatpush2.bf16.msra.mxu0 0
        %841 = vmatprep.subr.bf16.mxu0 0
        %842 = vmatpush2.bf16.msra.mxu0 0
        %843 = vmatprep.subr.bf16.mxu0 0
        %844 = vmatpush2.bf16.msra.mxu0 0
        %845 = vmatprep.subr.bf16.mxu0 0
        %846 = vmatpush2.bf16.msra.mxu0 0
        %847 = vmatprep.subr.bf16.mxu0 0
        %848 = vmatpush2.bf16.msra.mxu0 0
        %849 = vmatprep.subr.bf16.mxu0 0
        %850 = vmatpush2.bf16.msra.mxu0 0
        %851 = vmatprep.subr.bf16.mxu0 0
        %852 = vmatpush2.bf16.msra.mxu0 0
        %853 = vmatprep.mubr.bf16.mxu0 0
        %854 = vmatmul.mubr.bf16.gmra.mxu0 %v749
        %v855 = vpop.f32.mrf.mxu0
        %v856 = vadd.f32 %v771, %v855
        %v857 = vpop.f32.mrf.mxu0
        %v858 = vpop.f32.mrf.mxu0
        %v859 = vadd.f32 %v771, %v858
        %v860 = vpop.f32.mrf.mxu0
        %861 = vdwg.mxu0
        %v862 = vpack.c.bf16 %v859, %v856
        %v864 = vunpack.c.l.b16 %v862
        %v865 = vunpack.c.h.b16 %v862
        %v866 = vpack.c.b16 %v864, %v864
        %v867 = vpack.c.b16 %v865, %v865
        %870 = vst [vmem:[%s414] sm:$0xf] %v866
        %871 = vst [vmem:[%s414 + $0x4] sm:$0xf] %v867
        %s872 = sand.u32 %s230, 1
        %s873 = scalar_lea.sflag [#allocation4], %s872
        %s874 = sand.u32 %s230, 1
        %s875 = smul.addr %s874, 8
        %s876 = scalar_lea.vmem [#allocation11], %s875
        // Predicated region
        $region77: #{tpu_custom_call.1} parent=55 // pred_check
          %p877 = pneg %p240
        $region78: #{tpu_custom_call.1} parent=55 // pred_check_branch
          %879 = sbr.rel (%p877) target = $region80
        $region79: #{tpu_custom_call.1} parent=55 // pred_region
          %s880 = smul.u32 2, %s28
          %s881 = ssub.s32 3, %s880
          %p882 = scmp.lt.s32.totalorder %s881, 2
          %s883 = scalar_select %p882, %s881, 2
          %s884 = smul.u32 64, %s883
          %s886 = ssub.s32 128, %s884
          %887 = vsyncadd %s873, %s886
          %p888 = scmp.ne.s32.totalorder 0, %s884
          %s889 = smul.addr %s880, 64
          %s890 = scalar_lea.hbm %s9, %s889
          %s891 = smul.u32 4, %s883
          %s892 = sshll.u32 %s876, 4
          %s893 = int_to_ptr.vmem [resolvable:$true] %s892
          %s894 = sshll.u32 %s891, 4
          %898 = dma.vmem_to_hbm [thread:$0]  (%p888), %s893, %s894, %s890, %s873, 64, 64, 4
        $region80: #{tpu_custom_call.1} parent=55 // pred_fallthru
          _
      $region56: #{tpu_custom_call.1} parent=5 // pred_fallthru
        _
      %p899 = scmp.le.s32.totalorder 2, %s23
      // Predicated region
      $region81: #{tpu_custom_call.1} parent=5 // pred_check
        %p900 = pneg %p899
      $region82: #{tpu_custom_call.1} parent=5 // pred_check_branch
        %902 = sbr.rel (%p900) target = $region84
      $region83: #{tpu_custom_call.1} parent=5 // pred_region
        %s903 = ssub.s32 %s23, 2
        // Predicated region
        $region85: #{tpu_custom_call.1} parent=83 // pred_check
          %p904 = pneg %p246
        $region86: #{tpu_custom_call.1} parent=83 // pred_check_branch
          %906 = sbr.rel (%p904) target = $region88
        $region87: #{tpu_custom_call.1} parent=83 // pred_region
          %s907 = sand.u32 %s231, 1
          %s908 = scalar_lea.sflag [#allocation4], %s907
          %s909 = sand.u32 %s231, 1
          %s910 = smul.addr %s909, 8
          %s911 = scalar_lea.vmem [#allocation11], %s910
          %912 = dma.done %s908, 128
        $region88: #{tpu_custom_call.1} parent=83 // pred_fallthru
          _
      $region84: #{tpu_custom_call.1} parent=5 // pred_fallthru
        _
    $region6: #{tpu_custom_call.1} parent=1 // loop_footer
      %s27 = sadd.s32 1, %s23
    $region7: #{tpu_custom_call.1} parent=1 // loop_footer_branch
      %22 = sbr.rel target = $region3
    $region8: #{tpu_custom_call.1} parent=1 // loop_exit
      _
    %913 = vsyncpa [#allocation3], 1
    %s914 = scalar_lea.sflag [#allocation3], 1
    %915 = vsyncpa %s914, 1
    %916 = vsyncpa [#allocation6], 1
    %917 = vsyncpa [#allocation9], 1
    %918 = vsyncpa [#allocation4], 1
    %s919 = scalar_lea.sflag [#allocation4], 1
    %920 = vsyncpa %s919, 1

</llo_original>
